<compile_context>
chip_gen: v7x
topology: tpu7x:2x2x1
jax: 0.10.0
libtpu: 0.0.40
codegen_flags: <defaults>
</compile_context>

<pallas_src>
import functools

import jax
import jax.numpy as jnp
from jax.experimental import pallas as pl
from jax.experimental.pallas import tpu as pltpu


# ----------------------------- Pallas kernel ------------------------------ #
def dir_sage_layer_kernel(apply_relu, g_ref, a_ref, dinv_ref, b_ref,
                          out_ref, acc_ref):
    """One DirGNN layer step in transposed layout.

    grid = (j over node columns [parallel], k over reduction [arbitrary]).
      acc[d] += G[d][:, k-tile] @ A^T[d][k-tile, j-tile]          d in {in, out}
      finalize: out = acc[0]*dinv_in + acc[1]*dinv_out + bias     (+ relu)
    """
    k = pl.program_id(1)

    @pl.when(k == 0)
    def _():
        acc_ref[...] = jnp.zeros_like(acc_ref)

    # int8 edge-count tiles -> bf16 (exact for small counts).  The HBM DMA is
    # what dominates the step; int8 storage halves it.  Explicit two-step cast
    # (i8 -> f32 -> bf16) uses only well-supported VPU conversions.
    a_in = a_ref[0].astype(jnp.float32).astype(jnp.bfloat16)     # (tk, tn)
    a_out = a_ref[1].astype(jnp.float32).astype(jnp.bfloat16)

    acc_ref[0] = acc_ref[0] + jnp.dot(g_ref[0], a_in,
                                      preferred_element_type=jnp.float32)
    acc_ref[1] = acc_ref[1] + jnp.dot(g_ref[1], a_out,
                                      preferred_element_type=jnp.float32)

    @pl.when(k == pl.num_programs(1) - 1)
    def _():
        # Mean normalization as a per-node-column (lane) f32 scale.
        res = (acc_ref[0] * dinv_ref[0]
               + acc_ref[1] * dinv_ref[1]
               + b_ref[...])
        if apply_relu:
            res = jnp.maximum(res, 0.0)
        out_ref[...] = res.astype(out_ref.dtype)


# ------------------------------- helpers ----------------------------------- #
def _round_up(x, m):
    return (x + m - 1) // m * m


def _tile_cap():
    """Per-generation tile cap: v7x TensorCores only have 64 MiB VMEM."""
    try:
        kind = jax.devices()[0].device_kind.lower()
    except Exception:
        kind = ""
    return 1024 if ("v7" in kind or "7x" in kind) else 2048


def _pick_tiling(n, cap):
    """Choose (n_pad, tile): tile a multiple of 128, tile | n_pad, tile <= cap,
    grid_j >= 2 whenever the graph spans more than one 128-lane tile."""
    n128 = _round_up(max(n, 1), 128)
    tile = min(cap, n128)
    if n128 >= 256:                                   # keep >=2 node-column tiles
        tile = min(tile, _round_up((n128 + 1) // 2, 128))
    tile = max(tile, 128)
    n_pad = _round_up(n, tile)
    return n_pad, tile


def _vmem_limit_bytes(c_out, tk, tn, adj_itemsize, out_itemsize):
    """Derive the scoped-VMEM limit from the actual tile footprint."""
    adj_db = 2 * (2 * tk * tn * adj_itemsize)         # stacked A^T, double buffered
    cast_tmp = 2 * tk * tn * (2 + 4)                  # bf16 operands (+ f32 temps)
    g_db = 2 * (2 * c_out * tk * 2)                   # stacked G (bf16), double buffered
    dinv_db = 2 * (2 * 1 * tn * 4)
    bias_db = 2 * (c_out * 1 * 4)
    out_db = 2 * (c_out * tn * out_itemsize)
    acc = 2 * c_out * tn * 4
    total = adj_db + cast_tmp + g_db + dinv_db + bias_db + out_db + acc
    return int(min(max(int(total * 1.3) + (8 << 20), 32 << 20), 110 << 20))


def _build_adjacency(edge_index, n_pad):
    """One-pass, O(E) prep of the stacked, padded, *transposed*, unnormalized
    int8 adjacency plus f32 inverse degrees.

      adj[0, s, d] = #edges s->d  (= A_in^T)     dinv[0, 0, i] = 1 / in_deg(i)
      adj[1, d, s] = #edges s->d  (= A_out^T)    dinv[1, 0, i] = 1 / out_deg(i)

    Padded rows/cols are never touched (edge ids < n), so padded node columns
    can never leak into real outputs."""
    src = edge_index[0].astype(jnp.int32)
    dst = edge_index[1].astype(jnp.int32)
    e = src.shape[0]

    dir_idx = jnp.concatenate([jnp.zeros((e,), jnp.int32),
                               jnp.ones((e,), jnp.int32)])
    rows = jnp.concatenate([src, dst])
    cols = jnp.concatenate([dst, src])
    adj = jnp.zeros((2, n_pad, n_pad), jnp.int8).at[dir_idx, rows, cols].add(
        jnp.ones((2 * e,), jnp.int8))

    deg_in = jnp.zeros((n_pad,), jnp.float32).at[dst].add(1.0)
    deg_out = jnp.zeros((n_pad,), jnp.float32).at[src].add(1.0)
    deg = jnp.stack([deg_in, deg_out])
    dinv = jnp.where(deg > 0.0, 1.0 / jnp.maximum(deg, 1.0), 0.0)
    return adj, dinv.reshape(2, 1, n_pad)


# ------------------------------- layer call -------------------------------- #
def _dir_sage_layer(g, adj, dinv, b_col, *, relu, out_dtype, tile):
    """g: (2, C_out, N_pad) bf16; adj: (2, N_pad, N_pad) int8;
    dinv: (2, 1, N_pad) f32; b_col: (C_out, 1) f32.  Returns (C_out, N_pad)."""
    _, c_out, n_pad = g.shape
    tn = tk = tile
    grid = (n_pad // tn, n_pad // tk)
    out_itemsize = jnp.dtype(out_dtype).itemsize

    cost = pl.CostEstimate(
        flops=4 * c_out * n_pad * n_pad,
        transcendentals=0,
        bytes_accessed=(2 * n_pad * n_pad * adj.dtype.itemsize   # both adjacencies
                        + grid[0] * 2 * c_out * n_pad * 2        # G re-fetched per j tile
                        + grid[0] * 2 * n_pad * 4                # dinv re-fetched per j tile
                        + c_out * n_pad * out_itemsize           # output
                        + c_out * 4))                            # bias

    return pl.pallas_call(
        functools.partial(dir_sage_layer_kernel, relu),
        out_shape=jax.ShapeDtypeStruct((c_out, n_pad), out_dtype),
        grid=grid,
        in_specs=[
            pl.BlockSpec((2, c_out, tk), lambda j, k: (0, 0, k)),   # stacked G (bf16)
            pl.BlockSpec((2, tk, tn), lambda j, k: (0, k, j)),      # stacked A^T (int8)
            pl.BlockSpec((2, 1, tn), lambda j, k: (0, 0, j)),       # stacked 1/deg (f32)
            pl.BlockSpec((c_out, 1), lambda j, k: (0, 0)),          # blended bias (resident)
        ],
        out_specs=pl.BlockSpec((c_out, tn), lambda j, k: (0, j)),
        scratch_shapes=[pltpu.VMEM((2, c_out, tn), jnp.float32)],
        compiler_params=pltpu.CompilerParams(
            dimension_semantics=("parallel", "arbitrary"),
            vmem_limit_bytes=_vmem_limit_bytes(c_out, tk, tn,
                                               adj.dtype.itemsize, out_itemsize)),
        cost_estimate=cost,
    )(g, adj, dinv, b_col)


def dirgnn_forward(x, edge_index, params, alpha, *, tile=None):
    n = x.shape[0]
    out_channels = params["w2_in"].shape[1]

    cap = _tile_cap()
    if tile is None:
        n_pad, tile = _pick_tiling(n, cap)
    else:
        tile = max(128, _round_up(min(tile, cap), 128))
        n_pad = _round_up(n, tile)

    adj, dinv = _build_adjacency(edge_index, n_pad)

    xT = jnp.pad(x.astype(jnp.float32).T, ((0, 0), (0, n_pad - n)))

    def fold(prefix, hT):
        """Hoisted per-direction projections with alpha folded in, plus the
        blended bias: G[0]=(1-a)*W_in'@h^T, G[1]=a*W_out'@h^T (bf16, tiny)."""
        w_in, w_out = params[f"w{prefix}_in"], params[f"w{prefix}_out"]
        b_in, b_out = params[f"b{prefix}_in"], params[f"b{prefix}_out"]
        g = jnp.stack([
            (1.0 - alpha) * (w_in.T.astype(jnp.float32) @ hT),
            alpha * (w_out.T.astype(jnp.float32) @ hT),
        ]).astype(jnp.bfloat16)
        b = ((1.0 - alpha) * b_in + alpha * b_out).reshape(-1, 1).astype(jnp.float32)
        return g, b

    g1, b1 = fold(1, xT)
    h1 = _dir_sage_layer(g1, adj, dinv, b1, relu=True,
                         out_dtype=jnp.float32, tile=tile)     # (hidden, n_pad)

    g2, b2 = fold(2, h1)
    outT = _dir_sage_layer(g2, adj, dinv, b2, relu=False,
                           out_dtype=jnp.float32, tile=tile)   # (out, n_pad)

    return outT[:, :n].T.reshape(n, out_channels)


# --------------------------- reference / params ----------------------------- #
def build_mean_adj(src, dst, num_nodes):
    """Dense row-normalized adjacency (reference only)."""
    a = jnp.zeros((num_nodes, num_nodes), jnp.float32).at[dst, src].add(1.0)
    deg = a.sum(axis=1, keepdims=True)
    return a / jnp.where(deg > 0.0, deg, 1.0)


def dirgnn_reference(x, edge_index, params, alpha):
    """Pure-JAX f32 reference with identical semantics (for validation)."""
    n = x.shape[0]
    a_in = build_mean_adj(edge_index[0], edge_index[1], n)
    a_out = build_mean_adj(edge_index[1], edge_index[0], n)

    def layer(h, w_in, b_in, w_out, b_out):
        h_in = (a_in @ h) @ w_in + b_in
        h_out = (a_out @ h) @ w_out + b_out
        return alpha * h_out + (1.0 - alpha) * h_in

    h = jnp.maximum(layer(x, params["w1_in"], params["b1_in"],
                          params["w1_out"], params["b1_out"]), 0.0)
    return layer(h, params["w2_in"], params["b2_in"],
                 params["w2_out"], params["b2_out"])


def init_params(key, in_channels, hidden_channels, out_channels):
    """Mimics torch.nn.Linear default init (U(-k, k), k = 1/sqrt(fan_in)).
    Weights stored as [fan_in, fan_out]; biases as [1, fan_out]."""
    params = {}
    shapes = {
        "w1_in": (in_channels, hidden_channels), "b1_in": (1, hidden_channels),
        "w1_out": (in_channels, hidden_channels), "b1_out": (1, hidden_channels),
        "w2_in": (hidden_channels, out_channels), "b2_in": (1, out_channels),
        "w2_out": (hidden_channels, out_channels), "b2_out": (1, out_channels),
    }
    keys = jax.random.split(key, len(shapes))
    for k, (name, shape) in zip(keys, shapes.items()):
        fan_in = shape[0] if name.startswith("w") else shapes["w" + name[1:]][0]
        bound = 1.0 / (fan_in ** 0.5)
        params[name] = jax.random.uniform(k, shape, jnp.float32, -bound, bound)
    return params


# --------------------------------- main ------------------------------------ #
if __name__ == "__main__":
    key = jax.random.PRNGKey(0)
    k_x, k_e, k_p = jax.random.split(key, 3)

    num_nodes = 512
    num_edges = 2048
    in_channels = 16
    hidden_channels = 32
    out_channels = 8
    alpha = 0.5

    x = jax.random.normal(k_x, (num_nodes, in_channels), jnp.float32)
    edge_index = jax.random.randint(k_e, (2, num_edges), 0, num_nodes, jnp.int32)
    params = init_params(k_p, in_channels, hidden_channels, out_channels)

    # n=512 -> auto tiling picks tile=256, per-layer grid (2, 2): exercises the
    # pipelined reduction axis and the parallel node-column axis.
    out = dirgnn_forward(x, edge_index, params, alpha)
    out = jax.block_until_ready(out)

    ref = dirgnn_reference(x, edge_index, params, alpha)
    assert out.shape == (num_nodes, out_channels)
    err = float(jnp.max(jnp.abs(out - ref)))
    scale = float(jnp.max(jnp.abs(ref))) + 1e-6
    assert err / scale < 2e-2, f"Pallas kernel mismatch vs reference (rel err {err / scale:.3e})"

    print("KERNEL_OK")
</pallas_src>

<mosaic_0001>
module attributes {stable_mosaic.version = 11 : i64} {
  func.func @dir_sage_layer_kernel(%arg0: i32, %arg1: i32, %arg2: memref<2x32x256xbf16, #tpu.memory_space<vmem>>, %arg3: memref<2x256x256xi8, #tpu.memory_space<vmem>>, %arg4: memref<2x1x256xf32, #tpu.memory_space<vmem>>, %arg5: memref<32x1xf32, #tpu.memory_space<vmem>>, %arg6: memref<32x256xf32, #tpu.memory_space<vmem>>, %arg7: memref<2x32x256xf32, #tpu.memory_space<vmem>>) attributes {dimension_semantics = [#tpu.dimension_semantics<parallel>, #tpu.dimension_semantics<arbitrary>], iteration_bounds = array<i64: 2, 2>, scalar_prefetch = 0 : i64, scratch_operands = 1 : i64, tpu.core_type = #tpu.core_type<tc>, window_params = [{transform_indices = @transform_0, window_bounds = array<i64: 2, 32, 256>}, {transform_indices = @transform_1, window_bounds = array<i64: 2, 256, 256>}, {transform_indices = @transform_2, window_bounds = array<i64: 2, 1, 256>}, {pipeline_mode = #tpu.pipeline_mode<synchronous>, transform_indices = @transform_3, window_bounds = array<i64: 32, 1>}, {transform_indices = @transform_4, window_bounds = array<i64: 32, 256>}]} {
    %c0_i32 = arith.constant 0 : i32
    %0 = arith.cmpi eq, %arg1, %c0_i32 : i32
    %1 = arith.extui %0 : i1 to i32
    %c0_i32_0 = arith.constant 0 : i32
    %2 = arith.cmpi ne, %1, %c0_i32_0 : i32
    scf.if %2 {
      %cst_25 = arith.constant 0.000000e+00 : f32
      %32 = vector.broadcast %cst_25 : f32 to vector<2x32x256xf32>
      %c0_26 = arith.constant 0 : index
      %c0_27 = arith.constant 0 : index
      %c0_28 = arith.constant 0 : index
      %33 = vector.load %arg7[%c0_26, %c0_27, %c0_28] : memref<2x32x256xf32, #tpu.memory_space<vmem>>, vector<2x32x256xf32>
      tpu.vector_store %arg7[%c0_26, %c0_27, %c0_28], %32 {strides = array<i32>} : memref<2x32x256xf32, #tpu.memory_space<vmem>>, vector<2x32x256xf32>,
    } else {
    }
    %c0 = arith.constant 0 : index
    %c0_1 = arith.constant 0 : index
    %c0_2 = arith.constant 0 : index
    %3 = vector.load %arg3[%c0, %c0_1, %c0_2] : memref<2x256x256xi8, #tpu.memory_space<vmem>>, vector<1x256x256xi8>
    %4 = vector.shape_cast %3 : vector<1x256x256xi8> to vector<256x256xi8>
    %5 = arith.sitofp %4 : vector<256x256xi8> to vector<256x256xf32>
    %6 = arith.truncf %5 : vector<256x256xf32> to vector<256x256xbf16>
    %c1 = arith.constant 1 : index
    %c0_3 = arith.constant 0 : index
    %c0_4 = arith.constant 0 : index
    %7 = vector.load %arg3[%c1, %c0_3, %c0_4] : memref<2x256x256xi8, #tpu.memory_space<vmem>>, vector<1x256x256xi8>
    %8 = vector.shape_cast %7 : vector<1x256x256xi8> to vector<256x256xi8>
    %9 = arith.sitofp %8 : vector<256x256xi8> to vector<256x256xf32>
    %10 = arith.truncf %9 : vector<256x256xf32> to vector<256x256xbf16>
    %c0_5 = arith.constant 0 : index
    %c0_6 = arith.constant 0 : index
    %c0_7 = arith.constant 0 : index
    %11 = vector.load %arg7[%c0_5, %c0_6, %c0_7] : memref<2x32x256xf32, #tpu.memory_space<vmem>>, vector<1x32x256xf32>
    %12 = vector.shape_cast %11 : vector<1x32x256xf32> to vector<32x256xf32>
    %c0_8 = arith.constant 0 : index
    %c0_9 = arith.constant 0 : index
    %c0_10 = arith.constant 0 : index
    %13 = vector.load %arg2[%c0_8, %c0_9, %c0_10] : memref<2x32x256xbf16, #tpu.memory_space<vmem>>, vector<1x32x256xbf16>
    %14 = vector.shape_cast %13 : vector<1x32x256xbf16> to vector<32x256xbf16>
    %cst = arith.constant dense<0.000000e+00> : vector<32x256xf32>
    %15 = tpu.matmul %14, %6, %cst {dimension_numbers = #tpu.dot_dimension_numbers<[1], [0], [0], [1], [0, 0, 1, 1], [], []>} : vector<32x256xbf16>, vector<256x256xbf16>, vector<32x256xf32> -> vector<32x256xf32>
    %16 = arith.addf %12, %15 : vector<32x256xf32>
    %c0_11 = arith.constant 0 : index
    %c0_12 = arith.constant 0 : index
    %c0_13 = arith.constant 0 : index
    %17 = vector.load %arg7[%c0_11, %c0_12, %c0_13] : memref<2x32x256xf32, #tpu.memory_space<vmem>>, vector<1x32x256xf32>
    %18 = vector.shape_cast %17 : vector<1x32x256xf32> to vector<32x256xf32>
    %19 = vector.shape_cast %16 : vector<32x256xf32> to vector<1x32x256xf32>
    tpu.vector_store %arg7[%c0_11, %c0_12, %c0_13], %19 {strides = array<i32>} : memref<2x32x256xf32, #tpu.memory_space<vmem>>, vector<1x32x256xf32>,
    %c1_14 = arith.constant 1 : index
    %c0_15 = arith.constant 0 : index
    %c0_16 = arith.constant 0 : index
    %20 = vector.load %arg7[%c1_14, %c0_15, %c0_16] : memref<2x32x256xf32, #tpu.memory_space<vmem>>, vector<1x32x256xf32>
    %21 = vector.shape_cast %20 : vector<1x32x256xf32> to vector<32x256xf32>
    %c1_17 = arith.constant 1 : index
    %c0_18 = arith.constant 0 : index
    %c0_19 = arith.constant 0 : index
    %22 = vector.load %arg2[%c1_17, %c0_18, %c0_19] : memref<2x32x256xbf16, #tpu.memory_space<vmem>>, vector<1x32x256xbf16>
    %23 = vector.shape_cast %22 : vector<1x32x256xbf16> to vector<32x256xbf16>
    %cst_20 = arith.constant dense<0.000000e+00> : vector<32x256xf32>
    %24 = tpu.matmul %23, %10, %cst_20 {dimension_numbers = #tpu.dot_dimension_numbers<[1], [0], [0], [1], [0, 0, 1, 1], [], []>} : vector<32x256xbf16>, vector<256x256xbf16>, vector<32x256xf32> -> vector<32x256xf32>
    %25 = arith.addf %21, %24 : vector<32x256xf32>
    %c1_21 = arith.constant 1 : index
    %c0_22 = arith.constant 0 : index
    %c0_23 = arith.constant 0 : index
    %26 = vector.load %arg7[%c1_21, %c0_22, %c0_23] : memref<2x32x256xf32, #tpu.memory_space<vmem>>, vector<1x32x256xf32>
    %27 = vector.shape_cast %26 : vector<1x32x256xf32> to vector<32x256xf32>
    %28 = vector.shape_cast %25 : vector<32x256xf32> to vector<1x32x256xf32>
    tpu.vector_store %arg7[%c1_21, %c0_22, %c0_23], %28 {strides = array<i32>} : memref<2x32x256xf32, #tpu.memory_space<vmem>>, vector<1x32x256xf32>,
    %c1_i32 = arith.constant 1 : i32
    %29 = arith.cmpi eq, %arg1, %c1_i32 : i32
    %30 = arith.extui %29 : i1 to i32
    %c0_i32_24 = arith.constant 0 : i32
    %31 = arith.cmpi ne, %30, %c0_i32_24 : i32
    scf.if %31 {
      %c0_25 = arith.constant 0 : index
      %c0_26 = arith.constant 0 : index
      %c0_27 = arith.constant 0 : index
      %32 = vector.load %arg7[%c0_25, %c0_26, %c0_27] : memref<2x32x256xf32, #tpu.memory_space<vmem>>, vector<1x32x256xf32>
      %33 = vector.shape_cast %32 : vector<1x32x256xf32> to vector<32x256xf32>
      %c0_28 = arith.constant 0 : index
      %c0_29 = arith.constant 0 : index
      %c0_30 = arith.constant 0 : index
      %34 = vector.load %arg4[%c0_28, %c0_29, %c0_30] : memref<2x1x256xf32, #tpu.memory_space<vmem>>, vector<1x1x256xf32>
      %35 = vector.shape_cast %34 : vector<1x1x256xf32> to vector<1x256xf32>
      %36 = vector.broadcast %35 : vector<1x256xf32> to vector<32x256xf32>
      %37 = arith.mulf %33, %36 : vector<32x256xf32>
      %c1_31 = arith.constant 1 : index
      %c0_32 = arith.constant 0 : index
      %c0_33 = arith.constant 0 : index
      %38 = vector.load %arg7[%c1_31, %c0_32, %c0_33] : memref<2x32x256xf32, #tpu.memory_space<vmem>>, vector<1x32x256xf32>
      %39 = vector.shape_cast %38 : vector<1x32x256xf32> to vector<32x256xf32>
      %c1_34 = arith.constant 1 : index
      %c0_35 = arith.constant 0 : index
      %c0_36 = arith.constant 0 : index
      %40 = vector.load %arg4[%c1_34, %c0_35, %c0_36] : memref<2x1x256xf32, #tpu.memory_space<vmem>>, vector<1x1x256xf32>
      %41 = vector.shape_cast %40 : vector<1x1x256xf32> to vector<1x256xf32>
      %42 = vector.broadcast %41 : vector<1x256xf32> to vector<32x256xf32>
      %43 = arith.mulf %39, %42 : vector<32x256xf32>
      %44 = arith.addf %37, %43 : vector<32x256xf32>
      %c0_37 = arith.constant 0 : index
      %c0_38 = arith.constant 0 : index
      %45 = vector.load %arg5[%c0_37, %c0_38] : memref<32x1xf32, #tpu.memory_space<vmem>>, vector<32x1xf32>
      %46 = vector.broadcast %45 : vector<32x1xf32> to vector<32x256xf32>
      %47 = arith.addf %44, %46 : vector<32x256xf32>
      %cst_39 = arith.constant 0.000000e+00 : f32
      %48 = vector.broadcast %cst_39 : f32 to vector<32x256xf32>
      %49 = arith.maximumf %47, %48 : vector<32x256xf32>
      %c0_40 = arith.constant 0 : index
      %c0_41 = arith.constant 0 : index
      %50 = vector.load %arg6[%c0_40, %c0_41] : memref<32x256xf32, #tpu.memory_space<vmem>>, vector<32x256xf32>
      tpu.vector_store %arg6[%c0_40, %c0_41], %49 {strides = array<i32>} : memref<32x256xf32, #tpu.memory_space<vmem>>, vector<32x256xf32>,
    } else {
    }
    return
  }
  func.func @transform_0(%arg0: i32, %arg1: i32) -> (i32, i32, i32) {
    %c0_i32 = arith.constant 0 : i32
    %c0_i32_0 = arith.constant 0 : i32
    %c0_i32_1 = arith.constant 0 : i32
    return %c0_i32, %c0_i32_0, %arg1 : i32, i32, i32
  }
  func.func @transform_1(%arg0: i32, %arg1: i32) -> (i32, i32, i32) {
    %c0_i32 = arith.constant 0 : i32
    %c0_i32_0 = arith.constant 0 : i32
    return %c0_i32, %arg1, %arg0 : i32, i32, i32
  }
  func.func @transform_2(%arg0: i32, %arg1: i32) -> (i32, i32, i32) {
    %c0_i32 = arith.constant 0 : i32
    %c0_i32_0 = arith.constant 0 : i32
    %c0_i32_1 = arith.constant 0 : i32
    return %c0_i32, %c0_i32_0, %arg0 : i32, i32, i32
  }
  func.func @transform_3(%arg0: i32, %arg1: i32) -> (i32, i32) {
    %c0_i32 = arith.constant 0 : i32
    %c0_i32_0 = arith.constant 0 : i32
    %c0_i32_1 = arith.constant 0 : i32
    return %c0_i32, %c0_i32_0 : i32, i32
  }
  func.func @transform_4(%arg0: i32, %arg1: i32) -> (i32, i32) {
    %c0_i32 = arith.constant 0 : i32
    %c0_i32_0 = arith.constant 0 : i32
    return %c0_i32, %arg0 : i32, i32
  }
}

</mosaic_0001>

<llo_original>
// kernel: tpu_custom_call.1
$region0: #{tpu_custom_call.1}
  #allocation0 [shape = 'u32[]', space=smem, size = 0x4, offset = 0x4, fixed_abs, tag = 'smem constant byte address 0x4 - core index']
  #allocation1 [shape = 'u32[144,128]{1,0:T(1,128)}', space=vmem, size = 0x12000, scoped, tag = 'internal scratch']
  #allocation2 [shape = 'f32[2,32,256]{2,1,0:T(8,128)}', space=vmem, size = 0x10000, scoped, tag = 'scratch operand']
  #allocation10 [shape = 's32[]', space=sflag, size = 0x4, offset = 0, fixed_abs, tag = 'sflag constant byte address 0x0 - dummy sync flag']
  %s0 = inlined_call_operand.hbm [shape: bf16[2,32,512], index: 0, kind: input, shape index: {}]
  %s1 = inlined_call_operand.hbm [shape: s8[2,512,512], index: 1, kind: input, shape index: {}]
  %s2 = inlined_call_operand.vmem [shape: f32[2,1,512], index: 2, kind: input, shape index: {}]
  %s3 = inlined_call_operand.vmem [shape: f32[32,1], index: 3, kind: input, shape index: {}]
  %s4 = inlined_call_operand.hbm [shape: f32[32,512], index: 4, kind: output, shape index: {}]
  %s5 = sld [smem:[#allocation0]]
  $region99: #{tpu_custom_call.1} parent=0
    _
  %s7 = ssub.s32 1, %s5
  %s8 = scalar_select 0, %s7, %s5
  $region1: #{tpu_custom_call.1} parent=0
    #allocation3 [shape = 'u8[65536]{0}', space=vmem, size = 0x10000, scoped, tag = 'input window, operand 0']
    #allocation4 [shape = 's32[2]{0}', space=sflag, size = 0x8, scoped, tag = 'scoped memory for tpu_custom_call.1']
    #allocation5 [shape = 's32[2]{0}', space=sflag, size = 0x8, scoped, tag = 'scoped memory for tpu_custom_call.1']
    #allocation6 [shape = 'u8[262144]{0}', space=vmem, size = 0x40000, scoped, tag = 'input window, operand 1']
    #allocation7 [shape = 's32[2]{0}', space=sflag, size = 0x8, scoped, tag = 'scoped memory for tpu_custom_call.1']
    #allocation8 [shape = 'u8[4096]{0}', space=vmem, size = 0x1000, scoped, tag = 'input window, operand 2']
    #allocation9 [shape = 'u8[65536]{0}', space=vmem, size = 0x10000, scoped, tag = 'output window, operand 0']
    %9 = vsyncpa [#allocation4], 0
    %s10 = scalar_lea.sflag [#allocation4], 1
    %11 = vsyncpa %s10, 0
    %12 = vsyncpa [#allocation7], 0
    %s13 = scalar_lea.sflag [#allocation7], 1
    %14 = vsyncpa %s13, 0
    %15 = vsyncpa [#allocation5], 0
    %s16 = scalar_lea.sflag [#allocation5], 1
    %17 = vsyncpa %s16, 0
    loop: start=0, step=1, limit=6
    $region2: #{tpu_custom_call.1} parent=1 // loop_pre_header
      _
    $region3: #{tpu_custom_call.1} parent=1 // loop_header
      %s19 = sphi 0, %s23
      %p20 = scmp.ge.s32.totalorder %s19, 6
      %s26 = sphi 0, %s38
      %s27 = sphi 0, %s34
      %s28 = sphi 0, %s26
      %s29 = sphi 0, %s27
      %s30 = sphi 0, %s28
      %s31 = sphi 0, %s29
      %s41 = sphi 0, %s43
      %s44 = sphi 0, %s41
      %s45 = sphi 0, %s44
      %s61 = sphi 0, %s45
      %s69 = sphi 0, %s71
      %s72 = sphi 0, %s69
      %s73 = sphi 0, %s72
      %s89 = sphi 0, %s73
      %s95 = sphi 0, %s97
      %s98 = sphi 0, %s95
      %s99 = sphi 0, %s98
      %s115 = sphi 0, %s99
      %s119 = sphi 0, %s119
      %s121 = sphi 0, %s119
      %s122 = sphi 0, %s121
      %s136 = sphi 0, %s122
      %s142 = sphi 0, %s144
      %s145 = sphi 0, %s142
      %s146 = sphi 0, %s145
      %s162 = sphi 0, %s146
    $region4: #{tpu_custom_call.1} parent=1 // loop_header_branch
      %22 = sbr.rel (%p20) target = $region8
    $region5: #{tpu_custom_call.1} parent=1 // loop_body
      %s24 = ssub.s32 %s19, 1
      %s25 = ssub.s32 %s19, 2
      %s32 = sadd.s32 1, %s27
      %p33 = scmp.ge.s32.totalorder %s32, 2
      %s34 = scalar_select %p33, 0, %s32
      %s35 = sadd.s32 1, %s26
      %s36 = scalar_select %p33, %s35, %s26
      %p37 = scmp.ge.s32.totalorder %s36, 2
      %s38 = scalar_select %p37, 0, %s36
      %s39 = ssub.s32 %s27, %s34
      %p40 = scmp.eq.s32.totalorder %s39, 0
      %s42 = sadd.s32 %s41, 1
      %s43 = scalar_select %p40, %s41, %s42
      %p46 = pneg %p40
      %p47 = scmp.eq.s32.totalorder %s19, 3
      %p48 = por %p46, %p47
      %p49 = scmp.ne.s32.totalorder %s41, %s44
      %p50 = scmp.eq.s32.totalorder %s19, 0
      %p51 = por %p49, %p50
      %p52 = scmp.ne.s32.totalorder %s41, %s44
      %p53 = scmp.eq.s32.totalorder %s24, 3
      %p54 = por %p52, %p53
      %p55 = scmp.ne.s32.totalorder %s44, %s45
      %p56 = scmp.eq.s32.totalorder %s24, 0
      %p57 = por %p55, %p56
      %p58 = scmp.ne.s32.totalorder %s44, %s45
      %p59 = scmp.eq.s32.totalorder %s25, 3
      %p60 = por %p58, %p59
      %p62 = scmp.ne.s32.totalorder %s45, %s61
      %p63 = scmp.eq.s32.totalorder %s25, 0
      %p64 = por %p62, %p63
      %s65 = ssub.s32 %s27, %s34
      %s66 = ssub.s32 %s26, %s38
      %s67 = sor.u32 %s65, %s66
      %p68 = scmp.eq.s32.totalorder %s67, 0
      %s70 = sadd.s32 %s69, 1
      %s71 = scalar_select %p68, %s69, %s70
      %p74 = pneg %p68
      %p75 = scmp.eq.s32.totalorder %s19, 3
      %p76 = por %p74, %p75
      %p77 = scmp.ne.s32.totalorder %s69, %s72
      %p78 = scmp.eq.s32.totalorder %s19, 0
      %p79 = por %p77, %p78
      %p80 = scmp.ne.s32.totalorder %s69, %s72
      %p81 = scmp.eq.s32.totalorder %s24, 3
      %p82 = por %p80, %p81
      %p83 = scmp.ne.s32.totalorder %s72, %s73
      %p84 = scmp.eq.s32.totalorder %s24, 0
      %p85 = por %p83, %p84
      %p86 = scmp.ne.s32.totalorder %s72, %s73
      %p87 = scmp.eq.s32.totalorder %s25, 3
      %p88 = por %p86, %p87
      %p90 = scmp.ne.s32.totalorder %s73, %s89
      %p91 = scmp.eq.s32.totalorder %s25, 0
      %p92 = por %p90, %p91
      %s93 = ssub.s32 %s26, %s38
      %p94 = scmp.eq.s32.totalorder %s93, 0
      %s96 = sadd.s32 %s95, 1
      %s97 = scalar_select %p94, %s95, %s96
      %p100 = pneg %p94
      %p101 = scmp.eq.s32.totalorder %s19, 3
      %p102 = por %p100, %p101
      %p103 = scmp.ne.s32.totalorder %s95, %s98
      %p104 = scmp.eq.s32.totalorder %s19, 0
      %p105 = por %p103, %p104
      %p106 = scmp.ne.s32.totalorder %s95, %s98
      %p107 = scmp.eq.s32.totalorder %s24, 3
      %p108 = por %p106, %p107
      %p109 = scmp.ne.s32.totalorder %s98, %s99
      %p110 = scmp.eq.s32.totalorder %s24, 0
      %p111 = por %p109, %p110
      %p112 = scmp.ne.s32.totalorder %s98, %s99
      %p113 = scmp.eq.s32.totalorder %s25, 3
      %p114 = por %p112, %p113
      %p116 = scmp.ne.s32.totalorder %s99, %s115
      %p117 = scmp.eq.s32.totalorder %s25, 0
      %p118 = por %p116, %p117
      %s120 = sadd.s32 %s119, 1
      %p123 = scmp.eq.s32.totalorder %s19, 3
      %p124 = scmp.ne.s32.totalorder %s119, %s121
      %p125 = scmp.eq.s32.totalorder %s19, 0
      %p126 = por %p124, %p125
      %p127 = scmp.ne.s32.totalorder %s119, %s121
      %p128 = scmp.eq.s32.totalorder %s24, 3
      %p129 = por %p127, %p128
      %p130 = scmp.ne.s32.totalorder %s121, %s122
      %p131 = scmp.eq.s32.totalorder %s24, 0
      %p132 = por %p130, %p131
      %p133 = scmp.ne.s32.totalorder %s121, %s122
      %p134 = scmp.eq.s32.totalorder %s25, 3
      %p135 = por %p133, %p134
      %p137 = scmp.ne.s32.totalorder %s122, %s136
      %p138 = scmp.eq.s32.totalorder %s25, 0
      %p139 = por %p137, %p138
      %s140 = ssub.s32 %s26, %s38
      %p141 = scmp.eq.s32.totalorder %s140, 0
      %s143 = sadd.s32 %s142, 1
      %s144 = scalar_select %p141, %s142, %s143
      %p147 = pneg %p141
      %p148 = scmp.eq.s32.totalorder %s19, 3
      %p149 = por %p147, %p148
      %p150 = scmp.ne.s32.totalorder %s142, %s145
      %p151 = scmp.eq.s32.totalorder %s19, 0
      %p152 = por %p150, %p151
      %p153 = scmp.ne.s32.totalorder %s142, %s145
      %p154 = scmp.eq.s32.totalorder %s24, 3
      %p155 = por %p153, %p154
      %p156 = scmp.ne.s32.totalorder %s145, %s146
      %p157 = scmp.eq.s32.totalorder %s24, 0
      %p158 = por %p156, %p157
      %p159 = scmp.ne.s32.totalorder %s145, %s146
      %p160 = scmp.eq.s32.totalorder %s25, 3
      %p161 = por %p159, %p160
      %p163 = scmp.ne.s32.totalorder %s146, %s162
      %p164 = scmp.eq.s32.totalorder %s25, 0
      %p165 = por %p163, %p164
      %p166 = scmp.le.s32.totalorder 1, %s19
      %p167 = scmp.lt.s32.totalorder %s19, 5
      %p168 = pnand %p166, %p167
      %p169 = pneg %p168
      // Predicated region
      $region9: #{tpu_custom_call.1} parent=5 // pred_check
        _
      $region10: #{tpu_custom_call.1} parent=5 // pred_check_branch
        %171 = sbr.rel (%p168) target = $region12
      $region11: #{tpu_custom_call.1} parent=5 // pred_region
        %s172 = ssub.s32 %s19, 1
        // Predicated region
        $region13: #{tpu_custom_call.1} parent=11 // pred_check
          %p173 = pneg %p132
        $region14: #{tpu_custom_call.1} parent=11 // pred_check_branch
          %175 = sbr.rel (%p173) target = $region16
        $region15: #{tpu_custom_call.1} parent=11 // pred_region
          _
        $region16: #{tpu_custom_call.1} parent=11 // pred_fallthru
          _
      $region12: #{tpu_custom_call.1} parent=5 // pred_fallthru
        _
      %p176 = scmp.lt.s32.totalorder %s19, 4
      // Predicated region
      $region17: #{tpu_custom_call.1} parent=5 // pred_check
        %p177 = pneg %p176
      $region18: #{tpu_custom_call.1} parent=5 // pred_check_branch
        %179 = sbr.rel (%p177) target = $region20
      $region19: #{tpu_custom_call.1} parent=5 // pred_region
        // Predicated region
        $region21: #{tpu_custom_call.1} parent=19 // pred_check
          %p180 = pneg %p51
        $region22: #{tpu_custom_call.1} parent=19 // pred_check_branch
          %182 = sbr.rel (%p180) target = $region24
        $region23: #{tpu_custom_call.1} parent=19 // pred_region
          %s183 = sand.u32 %s41, 1
          %s184 = scalar_lea.sflag [#allocation4], %s183
          %s185 = sand.u32 %s41, 1
          %s186 = smul.addr %s185, 64
          %s187 = scalar_lea.vmem [#allocation3], %s186
          %s188 = smul.u32 2, %s27
          %s190 = ssub.s32 1024, 1024
          %191 = vsyncadd %s184, %s190
          %s192 = smul.addr %s188, 64
          %s193 = scalar_lea.hbm %s0, %s192
          %s194 = sshll.u32 %s187, 4
          %s195 = int_to_ptr.vmem [resolvable:$true] %s194
          %200 = dma.hbm_to_vmem [thread:$0]  %s193, 1024, %s195, %s184, 256, 128, 8
        $region24: #{tpu_custom_call.1} parent=19 // pred_fallthru
          _
        // Predicated region
        $region25: #{tpu_custom_call.1} parent=19 // pred_check
          %p201 = pneg %p79
        $region26: #{tpu_custom_call.1} parent=19 // pred_check_branch
          %203 = sbr.rel (%p201) target = $region28
        $region27: #{tpu_custom_call.1} parent=19 // pred_region
          #allocation11 [shape = 'u32[6]{0}', space=smem, size = 0x18, scoped, tag = 'DMA stride descriptor']
          %s204 = sand.u32 %s69, 1
          %s205 = scalar_lea.sflag [#allocation7], %s204
          %s206 = sand.u32 %s69, 1
          %s207 = smul.addr %s206, 256
          %s208 = scalar_lea.vmem [#allocation6], %s207
          %s209 = smul.u32 8, %s27
          %s210 = smul.u32 2, %s26
          %s212 = ssub.s32 4096, 4096
          %213 = vsyncadd %s205, %s212
          %s214 = smul.addr %s209, 4
          %s215 = sadd.s32 %s210, %s214
          %s216 = smul.addr %s215, 128
          %s217 = scalar_lea.hbm %s1, %s216
          %s219 = sshll.u32 1, 14
          %s220 = sxor.u32 4294967295, %s219
          %s222 = sld [smem:[#allocation0]]
          %s223 = sadd.s32 2, %s222
          %s225 = sshll.u32 7, 26
          %s226 = sxor.u32 4294967295, %s225
          %s227 = sand.u32 0, %s226
          %s228 = sshll.u32 %s223, 26
          %s229 = sor.u32 %s227, %s228
          %s230 = sshll.u32 %s208, 4
          %s231 = int_to_ptr.vmem [resolvable:$true] %s230
          %237 = sst [smem:[#allocation11]] 8192
          %s238 = scalar_lea.smem [#allocation11], 1
          %239 = sst [smem:[%s238]] 2048
          %s240 = scalar_lea.smem [#allocation11], 2
          %241 = sst [smem:[%s240]] 8
          %s242 = scalar_lea.smem [#allocation11], 3
          %243 = sst [smem:[%s242]] 512
          %s244 = scalar_lea.smem [#allocation11], 4
          %245 = sst [smem:[%s244]] 256
          %s246 = scalar_lea.smem [#allocation11], 5
          %247 = sst [smem:[%s246]] 16
          %249 = dma.general %s217, 4096, %s231, %s205, [#allocation10], [#allocation11], %s229, 0
        $region28: #{tpu_custom_call.1} parent=19 // pred_fallthru
          _
        // Predicated region
        $region29: #{tpu_custom_call.1} parent=19 // pred_check
          %p250 = pneg %p105
        $region30: #{tpu_custom_call.1} parent=19 // pred_check_branch
          %252 = sbr.rel (%p250) target = $region32
        $region31: #{tpu_custom_call.1} parent=19 // pred_region
          %s253 = sand.u32 %s95, 1
          %s254 = sand.u32 %s95, 1
          %s255 = smul.addr %s254, 4
          %s256 = scalar_lea.vmem [#allocation8], %s255
          %s257 = smul.u32 2, %s26
          %s258 = scalar_lea.vmem %s2, %s257
          // Predicated region
          $region33: #{tpu_custom_call.1} parent=31 // pred_check
            _
          $region34: #{tpu_custom_call.1} parent=31 // pred_check_branch
            %260 = sbr.rel (0) target = $region36
          $region35: #{tpu_custom_call.1} parent=31 // pred_region
            // Predicated region
            $region37: #{tpu_custom_call.1} parent=35 // pred_check
              _
            $region38: #{tpu_custom_call.1} parent=35 // pred_check_branch
              %262 = sbr.rel target = $region40
            $region39: #{tpu_custom_call.1} parent=35 // pred_region
              // Predicated region
              $region52: #{tpu_custom_call.1} parent=39 // pred_check
                _
              $region53: #{tpu_custom_call.1} parent=39 // pred_check_branch
                %279 = sbr.rel (0) target = $region55
              $region54: #{tpu_custom_call.1} parent=39 // pred_region
                loop: start=0, step=1, limit=1
                $region56: #{tpu_custom_call.1} parent=54 // loop_pre_header
                  _
                $region57: #{tpu_custom_call.1} parent=54 // loop_header
                  %s282 = sphi 0, %s286
                  %p283 = scmp.ge.s32.totalorder %s282, 1
                  %s287 = sphi %s258, %s258
                  %s288 = sphi %s256, %s256
                $region58: #{tpu_custom_call.1} parent=54 // loop_header_branch
                  %285 = sbr.rel (%p283) target = $region62
                $region59: #{tpu_custom_call.1} parent=54 // loop_body
                  %v289 = vld [vmem:[%s287] sm:$0x3]
                  %290 = vst [vmem:[%s288] sm:$0x3] %v289
                  %v291 = vld [vmem:[%s287 + $0x4] sm:$0x3]
                  %292 = vst [vmem:[%s288 + $0x2] sm:$0x3] %v291
                $region60: #{tpu_custom_call.1} parent=54 // loop_footer
                  %s286 = sadd.s32 1, %s282
                $region61: #{tpu_custom_call.1} parent=54 // loop_footer_branch
                  %281 = sbr.rel target = $region57
                $region62: #{tpu_custom_call.1} parent=54 // loop_exit
                  _
              $region55: #{tpu_custom_call.1} parent=39 // pred_fallthru
                _
            $region40: #{tpu_custom_call.1} parent=35 // pred_fallthru
              _
            // Predicated region
            $region41: #{tpu_custom_call.1} parent=35 // pred_check
              _
            $region42: #{tpu_custom_call.1} parent=35 // pred_check_branch
              %264 = sbr.rel (0) target = $region44
            $region43: #{tpu_custom_call.1} parent=35 // pred_region
              loop: start=0, step=1, limit=1
              $region45: #{tpu_custom_call.1} parent=43 // loop_pre_header
                _
              $region46: #{tpu_custom_call.1} parent=43 // loop_header
                %s267 = sphi 0, %s271
                %p268 = scmp.ge.s32.totalorder %s267, 1
                %s272 = sphi %s258, %s258
                %s273 = sphi %s256, %s256
              $region47: #{tpu_custom_call.1} parent=43 // loop_header_branch
                %270 = sbr.rel (%p268) target = $region51
              $region48: #{tpu_custom_call.1} parent=43 // loop_body
                %v274 = vld [vmem:[%s272] sm:$0x3]
                %275 = vst [vmem:[%s273] sm:$0x3] %v274
                %v276 = vld [vmem:[%s272 + $0x4] sm:$0x3]
                %277 = vst [vmem:[%s273 + $0x2] sm:$0x3] %v276
              $region49: #{tpu_custom_call.1} parent=43 // loop_footer
                %s271 = sadd.s32 1, %s267
              $region50: #{tpu_custom_call.1} parent=43 // loop_footer_branch
                %266 = sbr.rel target = $region46
              $region51: #{tpu_custom_call.1} parent=43 // loop_exit
                _
            $region44: #{tpu_custom_call.1} parent=35 // pred_fallthru
              _
          $region36: #{tpu_custom_call.1} parent=31 // pred_fallthru
            _
          %293 = vnop
        $region32: #{tpu_custom_call.1} parent=19 // pred_fallthru
          _
      $region20: #{tpu_custom_call.1} parent=5 // pred_fallthru
        _
      %p294 = scmp.le.s32.totalorder 1, %s19
      %p295 = scmp.lt.s32.totalorder %s19, 5
      %p296 = pnand %p294, %p295
      %p297 = pneg %p296
      // Predicated region
      $region63: #{tpu_custom_call.1} parent=5 // pred_check
        _
      $region64: #{tpu_custom_call.1} parent=5 // pred_check_branch
        %299 = sbr.rel (%p296) target = $region66
      $region65: #{tpu_custom_call.1} parent=5 // pred_region
        %s300 = ssub.s32 %s19, 1
        %s301 = sand.u32 %s44, 1
        %s302 = scalar_lea.sflag [#allocation4], %s301
        %s303 = sand.u32 %s44, 1
        %s304 = smul.addr %s303, 64
        %s305 = scalar_lea.vmem [#allocation3], %s304
        // Predicated region
        $region67: #{tpu_custom_call.1} parent=65 // pred_check
          %p306 = pneg %p57
        $region68: #{tpu_custom_call.1} parent=65 // pred_check_branch
          %308 = sbr.rel (%p306) target = $region70
        $region69: #{tpu_custom_call.1} parent=65 // pred_region
          %309 = dma.done %s302, 1024
        $region70: #{tpu_custom_call.1} parent=65 // pred_fallthru
          _
        %s310 = sand.u32 %s72, 1
        %s311 = scalar_lea.sflag [#allocation7], %s310
        %s312 = sand.u32 %s72, 1
        %s313 = smul.addr %s312, 256
        %s314 = scalar_lea.vmem [#allocation6], %s313
        // Predicated region
        $region71: #{tpu_custom_call.1} parent=65 // pred_check
          %p315 = pneg %p85
        $region72: #{tpu_custom_call.1} parent=65 // pred_check_branch
          %317 = sbr.rel (%p315) target = $region74
        $region73: #{tpu_custom_call.1} parent=65 // pred_region
          %318 = dma.done %s311, 4096
        $region74: #{tpu_custom_call.1} parent=65 // pred_fallthru
          _
        %s319 = sand.u32 %s98, 1
        %s320 = sand.u32 %s98, 1
        %s321 = smul.addr %s320, 4
        %s322 = scalar_lea.vmem [#allocation8], %s321
        // Predicated region
        $region75: #{tpu_custom_call.1} parent=65 // pred_check
          %p323 = pneg %p111
        $region76: #{tpu_custom_call.1} parent=65 // pred_check_branch
          %325 = sbr.rel (%p323) target = $region78
        $region77: #{tpu_custom_call.1} parent=65 // pred_region
          _
        $region78: #{tpu_custom_call.1} parent=65 // pred_fallthru
          _
        %s326 = sand.u32 %s44, 1
        %s327 = scalar_lea.sflag [#allocation4], %s326
        %s328 = sand.u32 %s44, 1
        %s329 = smul.addr %s328, 64
        %s330 = scalar_lea.vmem [#allocation3], %s329
        %p331 = pneg %p57
        %p332 = pneg %p54
        %s333 = sand.u32 %s72, 1
        %s334 = scalar_lea.sflag [#allocation7], %s333
        %s335 = sand.u32 %s72, 1
        %s336 = smul.addr %s335, 256
        %s337 = scalar_lea.vmem [#allocation6], %s336
        %p338 = pneg %p85
        %p339 = pneg %p82
        %s340 = sand.u32 %s98, 1
        %s341 = sand.u32 %s98, 1
        %s342 = smul.addr %s341, 4
        %s343 = scalar_lea.vmem [#allocation8], %s342
        %p344 = pneg %p111
        %p345 = pneg %p108
        %p346 = pneg %p132
        %p347 = pneg %p129
        %p348 = pneg %p158
        %p349 = pneg %p155
        %s350 = sand.u32 %s145, 1
        %s351 = scalar_lea.sflag [#allocation5], %s350
        %s352 = sand.u32 %s145, 1
        %s353 = smul.addr %s352, 64
        %s354 = scalar_lea.vmem [#allocation9], %s353
        %s355 = smul.u32 2, %s29
        %s356 = smul.u32 8, %s29
        %s357 = smul.u32 2, %s28
        %s358 = smul.u32 2, %s28
        %s359 = smul.u32 2, %s28
        %p360 = scmp.eq.s32.totalorder %s29, 0
        // Predicated region
        $region79: #{tpu_custom_call.1} parent=65 // pred_check
          %p361 = pneg %p360
        $region80: #{tpu_custom_call.1} parent=65 // pred_check_branch
          %363 = sbr.rel (%p361) target = $region82
        $region81: #{tpu_custom_call.1} parent=65 // pred_region
          %364 = vst [vmem:[#allocation2] sm:$0xff] 0.0
          %365 = vst [vmem:[#allocation2 + $0x8] sm:$0xff] 0.0
          %366 = vst [vmem:[#allocation2 + $0x10] sm:$0xff] 0.0
          %367 = vst [vmem:[#allocation2 + $0x18] sm:$0xff] 0.0
          %368 = vst [vmem:[#allocation2 + $0x20] sm:$0xff] 0.0
          %369 = vst [vmem:[#allocation2 + $0x28] sm:$0xff] 0.0
          %370 = vst [vmem:[#allocation2 + $0x30] sm:$0xff] 0.0
          %371 = vst [vmem:[#allocation2 + $0x38] sm:$0xff] 0.0
          %372 = vst [vmem:[#allocation2 + $0x40] sm:$0xff] 0.0
          %373 = vst [vmem:[#allocation2 + $0x48] sm:$0xff] 0.0
          %374 = vst [vmem:[#allocation2 + $0x50] sm:$0xff] 0.0
          %375 = vst [vmem:[#allocation2 + $0x58] sm:$0xff] 0.0
          %376 = vst [vmem:[#allocation2 + $0x60] sm:$0xff] 0.0
          %377 = vst [vmem:[#allocation2 + $0x68] sm:$0xff] 0.0
          %378 = vst [vmem:[#allocation2 + $0x70] sm:$0xff] 0.0
          %379 = vst [vmem:[#allocation2 + $0x78] sm:$0xff] 0.0
        $region82: #{tpu_custom_call.1} parent=65 // pred_fallthru
          _
        %v380 = vld [vmem:[%s314] sm:$0xff]
        %v381 = vld [vmem:[%s314 + $0x8] sm:$0xff]
        %v382 = vld [vmem:[%s314 + $0x10] sm:$0xff]
        %v383 = vld [vmem:[%s314 + $0x18] sm:$0xff]
        %v384 = vld [vmem:[%s314 + $0x20] sm:$0xff]
        %v385 = vld [vmem:[%s314 + $0x28] sm:$0xff]
        %v386 = vld [vmem:[%s314 + $0x30] sm:$0xff]
        %v387 = vld [vmem:[%s314 + $0x38] sm:$0xff]
        %v388 = vld [vmem:[%s314 + $0x40] sm:$0xff]
        %v389 = vld [vmem:[%s314 + $0x48] sm:$0xff]
        %v390 = vld [vmem:[%s314 + $0x50] sm:$0xff]
        %v391 = vld [vmem:[%s314 + $0x58] sm:$0xff]
        %v392 = vld [vmem:[%s314 + $0x60] sm:$0xff]
        %v393 = vld [vmem:[%s314 + $0x68] sm:$0xff]
        %v394 = vld [vmem:[%s314 + $0x70] sm:$0xff]
        %v395 = vld [vmem:[%s314 + $0x78] sm:$0xff]
        %v396 = vunpack.c.l.s8.bf16 %v380
        %v397 = vunpack.c.l.s8.bf16 %v381
        %v398 = vunpack.c.h.s8.bf16 %v380
        %v399 = vunpack.c.h.s8.bf16 %v381
        %v400 = vunpack.c.l.s8.bf16 %v382
        %v401 = vunpack.c.l.s8.bf16 %v383
        %v402 = vunpack.c.h.s8.bf16 %v382
        %v403 = vunpack.c.h.s8.bf16 %v383
        %v404 = vunpack.c.l.s8.bf16 %v384
        %v405 = vunpack.c.l.s8.bf16 %v385
        %v406 = vunpack.c.h.s8.bf16 %v384
        %v407 = vunpack.c.h.s8.bf16 %v385
        %v408 = vunpack.c.l.s8.bf16 %v386
        %v409 = vunpack.c.l.s8.bf16 %v387
        %v410 = vunpack.c.h.s8.bf16 %v386
        %v411 = vunpack.c.h.s8.bf16 %v387
        %v412 = vunpack.c.l.s8.bf16 %v388
        %v413 = vunpack.c.l.s8.bf16 %v389
        %v414 = vunpack.c.h.s8.bf16 %v388
        %v415 = vunpack.c.h.s8.bf16 %v389
        %v416 = vunpack.c.l.s8.bf16 %v390
        %v417 = vunpack.c.l.s8.bf16 %v391
        %v418 = vunpack.c.h.s8.bf16 %v390
        %v419 = vunpack.c.h.s8.bf16 %v391
        %v420 = vunpack.c.l.s8.bf16 %v392
        %v421 = vunpack.c.l.s8.bf16 %v393
        %v422 = vunpack.c.h.s8.bf16 %v392
        %v423 = vunpack.c.h.s8.bf16 %v393
        %v424 = vunpack.c.l.s8.bf16 %v394
        %v425 = vunpack.c.l.s8.bf16 %v395
        %v426 = vunpack.c.h.s8.bf16 %v394
        %v427 = vunpack.c.h.s8.bf16 %v395
        %s428 = scalar_lea.vmem %s314, 128 [#allocation6]
        %v429 = vld [vmem:[%s428] sm:$0xff]
        %v430 = vld [vmem:[%s428 + $0x8] sm:$0xff]
        %v431 = vld [vmem:[%s428 + $0x10] sm:$0xff]
        %v432 = vld [vmem:[%s428 + $0x18] sm:$0xff]
        %v433 = vld [vmem:[%s428 + $0x20] sm:$0xff]
        %v434 = vld [vmem:[%s428 + $0x28] sm:$0xff]
        %v435 = vld [vmem:[%s428 + $0x30] sm:$0xff]
        %v436 = vld [vmem:[%s428 + $0x38] sm:$0xff]
        %v437 = vld [vmem:[%s428 + $0x40] sm:$0xff]
        %v438 = vld [vmem:[%s428 + $0x48] sm:$0xff]
        %v439 = vld [vmem:[%s428 + $0x50] sm:$0xff]
        %v440 = vld [vmem:[%s428 + $0x58] sm:$0xff]
        %v441 = vld [vmem:[%s428 + $0x60] sm:$0xff]
        %v442 = vld [vmem:[%s428 + $0x68] sm:$0xff]
        %v443 = vld [vmem:[%s428 + $0x70] sm:$0xff]
        %v444 = vld [vmem:[%s428 + $0x78] sm:$0xff]
        %v445 = vunpack.c.l.s8.bf16 %v429
        %v446 = vunpack.c.l.s8.bf16 %v430
        %v447 = vunpack.c.h.s8.bf16 %v429
        %v448 = vunpack.c.h.s8.bf16 %v430
        %v449 = vunpack.c.l.s8.bf16 %v431
        %v450 = vunpack.c.l.s8.bf16 %v432
        %v451 = vunpack.c.h.s8.bf16 %v431
        %v452 = vunpack.c.h.s8.bf16 %v432
        %v453 = vunpack.c.l.s8.bf16 %v433
        %v454 = vunpack.c.l.s8.bf16 %v434
        %v455 = vunpack.c.h.s8.bf16 %v433
        %v456 = vunpack.c.h.s8.bf16 %v434
        %v457 = vunpack.c.l.s8.bf16 %v435
        %v458 = vunpack.c.l.s8.bf16 %v436
        %v459 = vunpack.c.h.s8.bf16 %v435
        %v460 = vunpack.c.h.s8.bf16 %v436
        %v461 = vunpack.c.l.s8.bf16 %v437
        %v462 = vunpack.c.l.s8.bf16 %v438
        %v463 = vunpack.c.h.s8.bf16 %v437
        %v464 = vunpack.c.h.s8.bf16 %v438
        %v465 = vunpack.c.l.s8.bf16 %v439
        %v466 = vunpack.c.l.s8.bf16 %v440
        %v467 = vunpack.c.h.s8.bf16 %v439
        %v468 = vunpack.c.h.s8.bf16 %v440
        %v469 = vunpack.c.l.s8.bf16 %v441
        %v470 = vunpack.c.l.s8.bf16 %v442
        %v471 = vunpack.c.h.s8.bf16 %v441
        %v472 = vunpack.c.h.s8.bf16 %v442
        %v473 = vunpack.c.l.s8.bf16 %v443
        %v474 = vunpack.c.l.s8.bf16 %v444
        %v475 = vunpack.c.h.s8.bf16 %v443
        %v476 = vunpack.c.h.s8.bf16 %v444
        %v477 = vld [vmem:[#allocation2] sm:$0xff]
        %v478 = vld [vmem:[#allocation2 + $0x8] sm:$0xff]
        %v479 = vld [vmem:[#allocation2 + $0x10] sm:$0xff]
        %v480 = vld [vmem:[#allocation2 + $0x18] sm:$0xff]
        %v481 = vld [vmem:[#allocation2 + $0x20] sm:$0xff]
        %v482 = vld [vmem:[#allocation2 + $0x28] sm:$0xff]
        %v483 = vld [vmem:[#allocation2 + $0x30] sm:$0xff]
        %v484 = vld [vmem:[#allocation2 + $0x38] sm:$0xff]
        %v485 = vld [vmem:[%s305] sm:$0xff]
        %v486 = vld [vmem:[%s305 + $0x8] sm:$0xff]
        %v487 = vld [vmem:[%s305 + $0x10] sm:$0xff]
        %v488 = vld [vmem:[%s305 + $0x18] sm:$0xff]
        %v493 = vunpack.c.l.b16 %v485
        %v494 = vunpack.c.h.b16 %v485
        %v495 = vunpack.c.l.b16 %v486
        %v496 = vunpack.c.h.b16 %v486
        %v497 = vunpack.c.l.b16 %v487
        %v498 = vunpack.c.h.b16 %v487
        %v499 = vunpack.c.l.b16 %v488
        %v500 = vunpack.c.h.b16 %v488
        %v501 = vpack.c.b16 %v495, %v493
        %v502 = vpack.c.b16 %v496, %v494
        %v503 = vpack.c.b16 %v499, %v497
        %v504 = vpack.c.b16 %v500, %v498
        %509 = vmatprep.subr.bf16.mxu0 %v397
        %510 = vmatpush1.bf16.msra.mxu0 %v396
        %511 = vmatprep.subr.bf16.mxu0 %v399
        %512 = vmatpush1.bf16.msra.mxu0 %v398
        %513 = vmatprep.subr.bf16.mxu0 %v401
        %514 = vmatpush1.bf16.msra.mxu0 %v400
        %515 = vmatprep.subr.bf16.mxu0 %v403
        %516 = vmatpush1.bf16.msra.mxu0 %v402
        %517 = vmatprep.subr.bf16.mxu0 %v405
        %518 = vmatpush1.bf16.msra.mxu0 %v404
        %519 = vmatprep.subr.bf16.mxu0 %v407
        %520 = vmatpush1.bf16.msra.mxu0 %v406
        %521 = vmatprep.subr.bf16.mxu0 %v409
        %522 = vmatpush1.bf16.msra.mxu0 %v408
        %523 = vmatprep.subr.bf16.mxu0 %v411
        %524 = vmatpush1.bf16.msra.mxu0 %v410
        %525 = vmatprep.subr.bf16.mxu0 %v413
        %526 = vmatpush1.bf16.msra.mxu0 %v412
        %527 = vmatprep.subr.bf16.mxu0 %v415
        %528 = vmatpush1.bf16.msra.mxu0 %v414
        %529 = vmatprep.subr.bf16.mxu0 %v417
        %530 = vmatpush1.bf16.msra.mxu0 %v416
        %531 = vmatprep.subr.bf16.mxu0 %v419
        %532 = vmatpush1.bf16.msra.mxu0 %v418
        %533 = vmatprep.subr.bf16.mxu0 %v421
        %534 = vmatpush1.bf16.msra.mxu0 %v420
        %535 = vmatprep.subr.bf16.mxu0 %v423
        %536 = vmatpush1.bf16.msra.mxu0 %v422
        %537 = vmatprep.subr.bf16.mxu0 %v425
        %538 = vmatpush1.bf16.msra.mxu0 %v424
        %539 = vmatprep.subr.bf16.mxu0 %v427
        %540 = vmatpush1.bf16.msra.mxu0 %v426
        %541 = vmatprep.mubr.bf16.mxu0 %v502
        %542 = vmatmul.mubr.bf16.gmra.mrb[0].mxu0 %v501
        %v543 = vpop.f32.mrb[0].mxu0
        %v544 = vadd.f32 0.0, %v543
        %v545 = vpop.f32.mrb[0].mxu0
        %v546 = vadd.f32 0.0, %v545
        %v547 = vpop.f32.mrb[0].mxu0
        %v548 = vadd.f32 0.0, %v547
        %v549 = vpop.f32.mrb[0].mxu0
        %v550 = vadd.f32 0.0, %v549
        %551 = vmatprep.mubr.bf16.mxu0 %v504
        %552 = vmatmul.mubr.bf16.gmra.mrb[0].mxu0 %v503
        %v553 = vpop.f32.mrb[0].mxu0
        %v554 = vadd.f32 0.0, %v553
        %v555 = vpop.f32.mrb[0].mxu0
        %v556 = vadd.f32 0.0, %v555
        %v557 = vpop.f32.mrb[0].mxu0
        %v558 = vadd.f32 0.0, %v557
        %v559 = vpop.f32.mrb[0].mxu0
        %v560 = vadd.f32 0.0, %v559
        %561 = vdwg.mxu0
        %v562 = vadd.f32 %v477, %v544
        %v563 = vadd.f32 %v478, %v546
        %v564 = vadd.f32 %v479, %v548
        %v565 = vadd.f32 %v480, %v550
        %v566 = vadd.f32 %v481, %v554
        %v567 = vadd.f32 %v482, %v556
        %v568 = vadd.f32 %v483, %v558
        %v569 = vadd.f32 %v484, %v560
        %570 = vst [vmem:[#allocation2] sm:$0xff] %v562
        %571 = vst [vmem:[#allocation2 + $0x8] sm:$0xff] %v563
        %572 = vst [vmem:[#allocation2 + $0x10] sm:$0xff] %v564
        %573 = vst [vmem:[#allocation2 + $0x18] sm:$0xff] %v565
        %574 = vst [vmem:[#allocation2 + $0x20] sm:$0xff] %v566
        %575 = vst [vmem:[#allocation2 + $0x28] sm:$0xff] %v567
        %576 = vst [vmem:[#allocation2 + $0x30] sm:$0xff] %v568
        %577 = vst [vmem:[#allocation2 + $0x38] sm:$0xff] %v569
        %s578 = scalar_lea.vmem [#allocation2], 64
        %v579 = vld [vmem:[%s578] sm:$0xff]
        %v580 = vld [vmem:[%s578 + $0x8] sm:$0xff]
        %v581 = vld [vmem:[%s578 + $0x10] sm:$0xff]
        %v582 = vld [vmem:[%s578 + $0x18] sm:$0xff]
        %v583 = vld [vmem:[%s578 + $0x20] sm:$0xff]
        %v584 = vld [vmem:[%s578 + $0x28] sm:$0xff]
        %v585 = vld [vmem:[%s578 + $0x30] sm:$0xff]
        %v586 = vld [vmem:[%s578 + $0x38] sm:$0xff]
        %s587 = scalar_lea.vmem %s305, 32 [#allocation3]
        %v588 = vld [vmem:[%s587] sm:$0xff]
        %v589 = vld [vmem:[%s587 + $0x8] sm:$0xff]
        %v590 = vld [vmem:[%s587 + $0x10] sm:$0xff]
        %v591 = vld [vmem:[%s587 + $0x18] sm:$0xff]
        %v596 = vunpack.c.l.b16 %v588
        %v597 = vunpack.c.h.b16 %v588
        %v598 = vunpack.c.l.b16 %v589
        %v599 = vunpack.c.h.b16 %v589
        %v600 = vunpack.c.l.b16 %v590
        %v601 = vunpack.c.h.b16 %v590
        %v602 = vunpack.c.l.b16 %v591
        %v603 = vunpack.c.h.b16 %v591
        %v604 = vpack.c.b16 %v598, %v596
        %v605 = vpack.c.b16 %v599, %v597
        %v606 = vpack.c.b16 %v602, %v600
        %v607 = vpack.c.b16 %v603, %v601
        %612 = vmatprep.subr.bf16.mxu0 %v446
        %613 = vmatpush1.bf16.msra.mxu0 %v445
        %614 = vmatprep.subr.bf16.mxu0 %v448
        %615 = vmatpush1.bf16.msra.mxu0 %v447
        %616 = vmatprep.subr.bf16.mxu0 %v450
        %617 = vmatpush1.bf16.msra.mxu0 %v449
        %618 = vmatprep.subr.bf16.mxu0 %v452
        %619 = vmatpush1.bf16.msra.mxu0 %v451
        %620 = vmatprep.subr.bf16.mxu0 %v454
        %621 = vmatpush1.bf16.msra.mxu0 %v453
        %622 = vmatprep.subr.bf16.mxu0 %v456
        %623 = vmatpush1.bf16.msra.mxu0 %v455
        %624 = vmatprep.subr.bf16.mxu0 %v458
        %625 = vmatpush1.bf16.msra.mxu0 %v457
        %626 = vmatprep.subr.bf16.mxu0 %v460
        %627 = vmatpush1.bf16.msra.mxu0 %v459
        %628 = vmatprep.subr.bf16.mxu0 %v462
        %629 = vmatpush1.bf16.msra.mxu0 %v461
        %630 = vmatprep.subr.bf16.mxu0 %v464
        %631 = vmatpush1.bf16.msra.mxu0 %v463
        %632 = vmatprep.subr.bf16.mxu0 %v466
        %633 = vmatpush1.bf16.msra.mxu0 %v465
        %634 = vmatprep.subr.bf16.mxu0 %v468
        %635 = vmatpush1.bf16.msra.mxu0 %v467
        %636 = vmatprep.subr.bf16.mxu0 %v470
        %637 = vmatpush1.bf16.msra.mxu0 %v469
        %638 = vmatprep.subr.bf16.mxu0 %v472
        %639 = vmatpush1.bf16.msra.mxu0 %v471
        %640 = vmatprep.subr.bf16.mxu0 %v474
        %641 = vmatpush1.bf16.msra.mxu0 %v473
        %642 = vmatprep.subr.bf16.mxu0 %v476
        %643 = vmatpush1.bf16.msra.mxu0 %v475
        %644 = vmatprep.mubr.bf16.mxu0 %v605
        %645 = vmatmul.mubr.bf16.gmra.mrb[0].mxu0 %v604
        %v646 = vpop.f32.mrb[0].mxu0
        %v647 = vadd.f32 0.0, %v646
        %v648 = vpop.f32.mrb[0].mxu0
        %v649 = vadd.f32 0.0, %v648
        %v650 = vpop.f32.mrb[0].mxu0
        %v651 = vadd.f32 0.0, %v650
        %v652 = vpop.f32.mrb[0].mxu0
        %v653 = vadd.f32 0.0, %v652
        %654 = vmatprep.mubr.bf16.mxu0 %v607
        %655 = vmatmul.mubr.bf16.gmra.mrb[0].mxu0 %v606
        %v656 = vpop.f32.mrb[0].mxu0
        %v657 = vadd.f32 0.0, %v656
        %v658 = vpop.f32.mrb[0].mxu0
        %v659 = vadd.f32 0.0, %v658
        %v660 = vpop.f32.mrb[0].mxu0
        %v661 = vadd.f32 0.0, %v660
        %v662 = vpop.f32.mrb[0].mxu0
        %v663 = vadd.f32 0.0, %v662
        %664 = vdwg.mxu0
        %v665 = vadd.f32 %v579, %v647
        %v666 = vadd.f32 %v580, %v649
        %v667 = vadd.f32 %v581, %v651
        %v668 = vadd.f32 %v582, %v653
        %v669 = vadd.f32 %v583, %v657
        %v670 = vadd.f32 %v584, %v659
        %v671 = vadd.f32 %v585, %v661
        %v672 = vadd.f32 %v586, %v663
        %673 = vst [vmem:[%s578] sm:$0xff] %v665
        %674 = vst [vmem:[%s578 + $0x8] sm:$0xff] %v666
        %675 = vst [vmem:[%s578 + $0x10] sm:$0xff] %v667
        %676 = vst [vmem:[%s578 + $0x18] sm:$0xff] %v668
        %677 = vst [vmem:[%s578 + $0x20] sm:$0xff] %v669
        %678 = vst [vmem:[%s578 + $0x28] sm:$0xff] %v670
        %679 = vst [vmem:[%s578 + $0x30] sm:$0xff] %v671
        %680 = vst [vmem:[%s578 + $0x38] sm:$0xff] %v672
        %p681 = scmp.eq.s32.totalorder %s29, 1
        // Predicated region
        $region83: #{tpu_custom_call.1} parent=65 // pred_check
          %p682 = pneg %p681
        $region84: #{tpu_custom_call.1} parent=65 // pred_check_branch
          %684 = sbr.rel (%p682) target = $region86
        $region85: #{tpu_custom_call.1} parent=65 // pred_region
          %v685 = vld [vmem:[#allocation2] sm:$0xff]
          %v686 = vld [vmem:[#allocation2 + $0x8] sm:$0xff]
          %v687 = vld [vmem:[#allocation2 + $0x10] sm:$0xff]
          %v688 = vld [vmem:[#allocation2 + $0x18] sm:$0xff]
          %v689 = vld [vmem:[#allocation2 + $0x20] sm:$0xff]
          %v690 = vld [vmem:[#allocation2 + $0x28] sm:$0xff]
          %v691 = vld [vmem:[#allocation2 + $0x30] sm:$0xff]
          %v692 = vld [vmem:[#allocation2 + $0x38] sm:$0xff]
          %v693 = vld [vmem:[%s322] sm:$0x3]
          %v695 = vlaneseq
          %v696 = vshrl.u32 %v695, 7
          %v697 = vsub.s32 0, %v696
          %v698 = vrot.slane %v693, %v697
          %v699 = vlaneseq
          %v700 = vshrl.u32 %v699, 7
          %v701 = vsub.s32 1, %v700
          %v702 = vrot.slane %v693, %v701
          %v705 = vmul.f32 %v685, %v698
          %v706 = vmul.f32 %v686, %v702
          %v707 = vmul.f32 %v687, %v698
          %v708 = vmul.f32 %v688, %v702
          %v709 = vmul.f32 %v689, %v698
          %v710 = vmul.f32 %v690, %v702
          %v711 = vmul.f32 %v691, %v698
          %v712 = vmul.f32 %v692, %v702
          %v713 = vld [vmem:[%s578] sm:$0xff]
          %v714 = vld [vmem:[%s578 + $0x8] sm:$0xff]
          %v715 = vld [vmem:[%s578 + $0x10] sm:$0xff]
          %v716 = vld [vmem:[%s578 + $0x18] sm:$0xff]
          %v717 = vld [vmem:[%s578 + $0x20] sm:$0xff]
          %v718 = vld [vmem:[%s578 + $0x28] sm:$0xff]
          %v719 = vld [vmem:[%s578 + $0x30] sm:$0xff]
          %v720 = vld [vmem:[%s578 + $0x38] sm:$0xff]
          %s721 = scalar_lea.vmem %s322, 2 [#allocation8]
          %v722 = vld [vmem:[%s721] sm:$0x3]
          %v724 = vlaneseq
          %v725 = vshrl.u32 %v724, 7
          %v726 = vsub.s32 0, %v725
          %v727 = vrot.slane %v722, %v726
          %v728 = vlaneseq
          %v729 = vshrl.u32 %v728, 7
          %v730 = vsub.s32 1, %v729
          %v731 = vrot.slane %v722, %v730
          %v734 = vmul.f32 %v713, %v727
          %v735 = vmul.f32 %v714, %v731
          %v736 = vmul.f32 %v715, %v727
          %v737 = vmul.f32 %v716, %v731
          %v738 = vmul.f32 %v717, %v727
          %v739 = vmul.f32 %v718, %v731
          %v740 = vmul.f32 %v719, %v727
          %v741 = vmul.f32 %v720, %v731
          %v742 = vadd.f32 %v705, %v734
          %v743 = vadd.f32 %v706, %v735
          %v744 = vadd.f32 %v707, %v736
          %v745 = vadd.f32 %v708, %v737
          %v746 = vadd.f32 %v709, %v738
          %v747 = vadd.f32 %v710, %v739
          %v748 = vadd.f32 %v711, %v740
          %v749 = vadd.f32 %v712, %v741
          %v750 = vld [vmem:[%s3] sm:$0xff]
          %v751 = vld [vmem:[%s3 + $0x8] sm:$0xff]
          %v752 = vld [vmem:[%s3 + $0x10] sm:$0xff]
          %v753 = vld [vmem:[%s3 + $0x18] sm:$0xff]
          %755 = vset.pattern.permute.xlu0 0
          %756 = vperm.xlu0 %755, %v750
          %v757 = vpop.permute.xlu0 %756
          %760 = vset.pattern.permute.xlu0 0
          %761 = vperm.xlu0 %760, %v751
          %v762 = vpop.permute.xlu0 %761
          %765 = vset.pattern.permute.xlu0 0
          %766 = vperm.xlu0 %765, %v752
          %v767 = vpop.permute.xlu0 %766
          %770 = vset.pattern.permute.xlu0 0
          %771 = vperm.xlu0 %770, %v753
          %v772 = vpop.permute.xlu0 %771
          %v774 = vadd.f32 %v742, %v757
          %v775 = vadd.f32 %v743, %v757
          %v776 = vadd.f32 %v744, %v762
          %v777 = vadd.f32 %v745, %v762
          %v778 = vadd.f32 %v746, %v767
          %v779 = vadd.f32 %v747, %v767
          %v780 = vadd.f32 %v748, %v772
          %v781 = vadd.f32 %v749, %v772
          %v782 = vmax.f32 %v774, 0.0
          %v783 = vmax.f32 %v775, 0.0
          %v784 = vmax.f32 %v776, 0.0
          %v785 = vmax.f32 %v777, 0.0
          %v786 = vmax.f32 %v778, 0.0
          %v787 = vmax.f32 %v779, 0.0
          %v788 = vmax.f32 %v780, 0.0
          %v789 = vmax.f32 %v781, 0.0
          %790 = vst [vmem:[%s354] sm:$0xff] %v782
          %791 = vst [vmem:[%s354 + $0x8] sm:$0xff] %v783
          %792 = vst [vmem:[%s354 + $0x10] sm:$0xff] %v784
          %793 = vst [vmem:[%s354 + $0x18] sm:$0xff] %v785
          %794 = vst [vmem:[%s354 + $0x20] sm:$0xff] %v786
          %795 = vst [vmem:[%s354 + $0x28] sm:$0xff] %v787
          %796 = vst [vmem:[%s354 + $0x30] sm:$0xff] %v788
          %797 = vst [vmem:[%s354 + $0x38] sm:$0xff] %v789
        $region86: #{tpu_custom_call.1} parent=65 // pred_fallthru
          _
        %s798 = sand.u32 %s145, 1
        %s799 = scalar_lea.sflag [#allocation5], %s798
        %s800 = sand.u32 %s145, 1
        %s801 = smul.addr %s800, 64
        %s802 = scalar_lea.vmem [#allocation9], %s801
        // Predicated region
        $region87: #{tpu_custom_call.1} parent=65 // pred_check
          %p803 = pneg %p155
        $region88: #{tpu_custom_call.1} parent=65 // pred_check_branch
          %805 = sbr.rel (%p803) target = $region90
        $region89: #{tpu_custom_call.1} parent=65 // pred_region
          %s806 = smul.u32 2, %s28
          %s808 = ssub.s32 1024, 1024
          %809 = vsyncadd %s799, %s808
          %s810 = smul.addr %s806, 128
          %s811 = scalar_lea.hbm %s4, %s810
          %s812 = sshll.u32 %s802, 4
          %s813 = int_to_ptr.vmem [resolvable:$true] %s812
          %818 = dma.vmem_to_hbm [thread:$0]  %s813, 1024, %s811, %s799, 256, 512, 16
        $region90: #{tpu_custom_call.1} parent=65 // pred_fallthru
          _
      $region66: #{tpu_custom_call.1} parent=5 // pred_fallthru
        _
      %p819 = scmp.le.s32.totalorder 2, %s19
      // Predicated region
      $region91: #{tpu_custom_call.1} parent=5 // pred_check
        %p820 = pneg %p819
      $region92: #{tpu_custom_call.1} parent=5 // pred_check_branch
        %822 = sbr.rel (%p820) target = $region94
      $region93: #{tpu_custom_call.1} parent=5 // pred_region
        %s823 = ssub.s32 %s19, 2
        // Predicated region
        $region95: #{tpu_custom_call.1} parent=93 // pred_check
          %p824 = pneg %p161
        $region96: #{tpu_custom_call.1} parent=93 // pred_check_branch
          %826 = sbr.rel (%p824) target = $region98
        $region97: #{tpu_custom_call.1} parent=93 // pred_region
          %s827 = sand.u32 %s146, 1
          %s828 = scalar_lea.sflag [#allocation5], %s827
          %s829 = sand.u32 %s146, 1
          %s830 = smul.addr %s829, 64
          %s831 = scalar_lea.vmem [#allocation9], %s830
          %832 = dma.done %s828, 1024
        $region98: #{tpu_custom_call.1} parent=93 // pred_fallthru
          _
      $region94: #{tpu_custom_call.1} parent=5 // pred_fallthru
        _
    $region6: #{tpu_custom_call.1} parent=1 // loop_footer
      %s23 = sadd.s32 1, %s19
    $region7: #{tpu_custom_call.1} parent=1 // loop_footer_branch
      %18 = sbr.rel target = $region3
    $region8: #{tpu_custom_call.1} parent=1 // loop_exit
      _
    %833 = vsyncpa [#allocation4], 1
    %s834 = scalar_lea.sflag [#allocation4], 1
    %835 = vsyncpa %s834, 1
    %836 = vsyncpa [#allocation7], 1
    %s837 = scalar_lea.sflag [#allocation7], 1
    %838 = vsyncpa %s837, 1
    %839 = vsyncpa [#allocation5], 1
    %s840 = scalar_lea.sflag [#allocation5], 1
    %841 = vsyncpa %s840, 1

</llo_original>
